<compile_context>
chip_gen: v6e
topology: v6e:2x2x1
jax: 0.10.0
libtpu: 0.0.40
codegen_flags: <defaults>
</compile_context>

<pallas_src>
import numpy as np
import jax
import jax.numpy as jnp
from jax import lax
from jax.experimental import pallas as pl
from jax.experimental.pallas import tpu as pltpu

_NEG = -1e30          # finite "minus infinity" additive mask
_LANES = 128


def _round_up(x: int, m: int) -> int:
    return (x + m - 1) // m * m


def _make_kernel(*, m: float, gamma: float, blk: int, has_pad: bool, mxu_dtype):
    m = float(m)
    gamma = float(gamma)

    def _norm(x):
        x = x.astype(jnp.float32)
        s = jnp.sum(x * x, axis=-1, keepdims=True)          # (blk, 1)
        inv = 1.0 / (jnp.sqrt(s) + 1e-12)                    # exact; matches ref eps
        return x * inv

    def kernel(xj_ref,                 # (blk, D)   column-block features
               lci_ref,                # (blk, 1)   row-block labels
               lrj_ref,                # (1, blk)   column-block labels
               bias_ref,               # (1, blk, blk) additive triu bias bank
               out_ref,                # (1, 4, blk) per-row-block LSE partials
               xi_c,                   # (blk, D)   cached normalized row block
               m_p, l_p, m_n, l_n):    # (1, blk)   per-lane running stats
        i = pl.program_id(0)
        dstep = pl.program_id(1)
        nb = pl.num_programs(1)

        @pl.when(i + dstep < nb)               # block-level triu: skip lower tiles
        def _compute():
            xj = _norm(xj_ref[...])                          # (blk, D) f32
            xj_mx = xj.astype(mxu_dtype)

            @pl.when(dstep == 0)                             # new row sweep
            def _row_start():
                z = jnp.zeros((1, blk), jnp.float32)
                m_p[...] = z
                l_p[...] = z
                m_n[...] = z
                l_n[...] = z
                xi_c[...] = xj_mx        # column block == row block at d == 0

            # MXU: similarity tile (contract over D, f32 accumulate).
            sim = lax.dot_general(xi_c[...], xj_mx, (((1,), (1,)), ((), ())),
                                  preferred_element_type=jnp.float32)

            same = lci_ref[...] == lrj_ref[...]              # (blk, blk)

            # circle-loss logits, gamma folded into one multiply.
            nap = jnp.minimum(sim - (1.0 + m), 0.0)          # == -clamp(1+m-s, 0)
            an = jnp.maximum(sim + m, 0.0)
            logit = jnp.where(same,
                              nap * (sim - (1.0 - m)),
                              an * (sim - m)) * gamma

            # additive masking: strict-upper bank on diagonal tiles, zeros else;
            # padded rows / cols (labels < 0) also pushed to -1e30.
            bias = bias_ref[0]
            if has_pad:
                bias = bias + jnp.where(lci_ref[...] < 0, _NEG, 0.0) \
                            + jnp.where(lrj_ref[...] < 0, _NEG, 0.0)
            blogit = logit + bias

            # online masked LSE, per-lane (sublane-only reductions per tile).
            vp = jnp.where(same, blogit, _NEG)
            vn = jnp.where(same, _NEG, blogit)
            new_mp = jnp.maximum(m_p[...], jnp.max(vp, axis=0, keepdims=True))
            new_mn = jnp.maximum(m_n[...], jnp.max(vn, axis=0, keepdims=True))

            shift = jnp.where(same, new_mp, new_mn)          # (1,blk) -> (blk,blk)
            e = jnp.exp(blogit - shift)                      # masked entries -> 0
            sp_sum = jnp.sum(jnp.where(same, e, 0.0), axis=0, keepdims=True)
            sn_sum = jnp.sum(jnp.where(same, 0.0, e), axis=0, keepdims=True)

            l_p[...] = l_p[...] * jnp.exp(m_p[...] - new_mp) + sp_sum
            l_n[...] = l_n[...] * jnp.exp(m_n[...] - new_mn) + sn_sum
            m_p[...] = new_mp
            m_n[...] = new_mn

        @pl.when(dstep == nb - 1)              # end of this row block's sweep
        def _finish():
            out_ref[:, 0, :] = m_p[...]
            out_ref[:, 1, :] = l_p[...]
            out_ref[:, 2, :] = m_n[...]
            out_ref[:, 3, :] = l_n[...]

    return kernel


def circle_loss_pallas(feat: jax.Array, label: jax.Array,
                       m: float = 0.25, gamma: float = 80.0) -> jax.Array:
    n, d_feat = feat.shape

    blk = min(_LANES, _round_up(max(n, 1), 8))
    n_pad = _round_up(n, blk)
    nb = n_pad // blk
    has_pad = n_pad != n

    # Features stay in their input dtype (no wrapper cast); kernel normalizes
    # in f32 and feeds the MXU in bf16 only if the input is already bf16.
    feat_p = jnp.pad(feat, ((0, n_pad - n), (0, 0))) if has_pad else feat
    lab = label.astype(jnp.int32)
    if has_pad:
        lab = lab - jnp.min(lab)                       # valid labels >= 0
        lab = jnp.pad(lab, (0, n_pad - n), constant_values=-1)
    lab_col = lab.reshape(n_pad, 1)
    lab_row = lab.reshape(1, n_pad)

    # Two additive-bias banks: bank 0 = off-diagonal tile (keep everything),
    # bank 1 = diagonal tile (keep strict upper triangle only).
    tri = jnp.triu(jnp.ones((blk, blk), jnp.float32), k=1)
    bias = jnp.stack([jnp.zeros((blk, blk), jnp.float32), (1.0 - tri) * _NEG])

    mxu_dtype = jnp.bfloat16 if feat.dtype == jnp.bfloat16 else jnp.float32

    kernel = _make_kernel(m=m, gamma=gamma, blk=blk,
                          has_pad=has_pad, mxu_dtype=mxu_dtype)

    n_tiles = nb * (nb + 1) // 2
    itemsize = jnp.dtype(feat.dtype).itemsize
    cost = pl.CostEstimate(
        flops=2 * n_tiles * blk * blk * d_feat + 3 * n_tiles * blk * d_feat,
        transcendentals=n_tiles * blk * blk,
        bytes_accessed=(n_tiles * (blk * d_feat * itemsize + blk * 4)
                        + 2 * nb * blk * blk * 4 + nb * 4 * blk * 4),
    )

    def _col(i, d):
        return jnp.minimum(i + d, nb - 1)              # clamp skipped steps

    grid_spec = pltpu.PrefetchScalarGridSpec(
        num_scalar_prefetch=0,
        grid=(nb, nb),
        in_specs=[
            pl.BlockSpec((blk, d_feat), lambda i, d: (_col(i, d), 0)),
            pl.BlockSpec((blk, 1), lambda i, d: (i, 0)),
            pl.BlockSpec((1, blk), lambda i, d: (0, _col(i, d))),
            pl.BlockSpec((1, blk, blk), lambda i, d: (jnp.where(d == 0, 1, 0), 0, 0)),
        ],
        out_specs=pl.BlockSpec((1, 4, blk), lambda i, d: (i, 0, 0)),
        scratch_shapes=[
            pltpu.VMEM((blk, d_feat), mxu_dtype),      # cached normalized row block
            pltpu.VMEM((1, blk), jnp.float32),         # m_p
            pltpu.VMEM((1, blk), jnp.float32),         # l_p
            pltpu.VMEM((1, blk), jnp.float32),         # m_n
            pltpu.VMEM((1, blk), jnp.float32),         # l_n
        ],
    )

    stats = pl.pallas_call(
        kernel,
        out_shape=jax.ShapeDtypeStruct((nb, 4, blk), jnp.float32),
        grid_spec=grid_spec,
        compiler_params=pltpu.CompilerParams(
            dimension_semantics=("parallel", "arbitrary"),   # megacore on row blocks
            vmem_limit_bytes=32 * 1024 * 1024,
        ),
        cost_estimate=cost,
    )(feat_p, lab_col, lab_row, bias)

    # Final cross-lane / cross-row-block LSE combine + softplus (tiny, wrapper).
    mp, lp = stats[:, 0, :], stats[:, 1, :]
    mn, ln = stats[:, 2, :], stats[:, 3, :]

    def _lse(mm, ll):
        gm = jnp.max(mm)                                # all mm >= 0 (clamped)
        return gm + jnp.log(jnp.sum(ll * jnp.exp(mm - gm)))

    z = _lse(mp, lp) + _lse(mn, ln)
    return jnp.maximum(z, 0.0) + jnp.log1p(jnp.exp(-jnp.abs(z)))


def _reference_circle_loss(feat, label, m, gamma):
    """Pure numpy reference mirroring the PyTorch module."""
    x = np.asarray(feat, np.float64)
    lab = np.asarray(label)
    x = x / (np.linalg.norm(x, axis=-1, keepdims=True) + 1e-12)
    sim = x @ x.T
    same = lab[:, None] == lab[None, :]
    triu = np.triu(np.ones_like(same, dtype=bool), k=1)
    sp = sim[same & triu]
    sn = sim[(~same) & triu]
    ap = np.clip(-sp + 1 + m, 0.0, None)
    an = np.clip(sn + m, 0.0, None)
    logit_p = -ap * (sp - (1 - m)) * gamma
    logit_n = an * (sn - m) * gamma

    def lse(v):
        vm = np.max(v)
        return vm + np.log(np.sum(np.exp(v - vm)))

    z = lse(logit_n) + lse(logit_p)
    return np.log1p(np.exp(-abs(z))) + max(z, 0.0)


if __name__ == "__main__":
    m, gamma = 0.25, 80.0

    # --- case 1: tiny, single block, no padding ---------------------------
    key = jax.random.PRNGKey(0)
    N, D = 8, 32
    feat = jax.random.normal(key, (N, D), dtype=jnp.float32)
    label = jnp.array([0, 1, 2, 0, 1, 2, 0, 1], dtype=jnp.int32)

    loss = jax.block_until_ready(circle_loss_pallas(feat, label, m=m, gamma=gamma))
    ref = _reference_circle_loss(np.asarray(feat), np.asarray(label), m, gamma)
    assert np.allclose(float(loss), float(ref), rtol=1e-3, atol=1e-3), \
        ("case1", float(loss), float(ref))

    # --- case 2: multi-block + padding + off-diagonal tiles ----------------
    k1, k2 = jax.random.split(jax.random.PRNGKey(1))
    N2, D2 = 200, 64
    feat2 = jax.random.normal(k1, (N2, D2), dtype=jnp.float32)
    label2 = jax.random.randint(k2, (N2,), 0, 5, dtype=jnp.int32)

    loss2 = jax.block_until_ready(circle_loss_pallas(feat2, label2, m=m, gamma=gamma))
    ref2 = _reference_circle_loss(np.asarray(feat2), np.asarray(label2), m, gamma)
    assert np.allclose(float(loss2), float(ref2), rtol=1e-3, atol=1e-2), \
        ("case2", float(loss2), float(ref2))

    print("KERNEL_OK")
</pallas_src>

<mosaic_0001>
module attributes {stable_mosaic.version = 11 : i64} {
  func.func @kernel(%arg0: i32, %arg1: i32, %arg2: memref<8x32xf32, #tpu.memory_space<vmem>>, %arg3: memref<8x1xi32, #tpu.memory_space<vmem>>, %arg4: memref<1x8xi32, #tpu.memory_space<vmem>>, %arg5: memref<1x8x8xf32, #tpu.memory_space<vmem>>, %arg6: memref<1x4x8xf32, #tpu.memory_space<vmem>>, %arg7: memref<8x32xf32, #tpu.memory_space<vmem>>, %arg8: memref<1x8xf32, #tpu.memory_space<vmem>>, %arg9: memref<1x8xf32, #tpu.memory_space<vmem>>, %arg10: memref<1x8xf32, #tpu.memory_space<vmem>>, %arg11: memref<1x8xf32, #tpu.memory_space<vmem>>) attributes {dimension_semantics = [#tpu.dimension_semantics<parallel>, #tpu.dimension_semantics<arbitrary>], iteration_bounds = array<i64: 1, 1>, scalar_prefetch = 0 : i64, scratch_operands = 5 : i64, tpu.core_type = #tpu.core_type<tc>, window_params = [{transform_indices = @transform_0, window_bounds = array<i64: 8, 32>}, {transform_indices = @transform_1, window_bounds = array<i64: 8, 1>}, {transform_indices = @transform_2, window_bounds = array<i64: 1, 8>}, {transform_indices = @transform_3, window_bounds = array<i64: 1, 8, 8>}, {transform_indices = @transform_4, window_bounds = array<i64: 1, 4, 8>}]} {
    %0 = arith.addi %arg0, %arg1 : i32
    %c1_i32 = arith.constant 1 : i32
    %1 = arith.cmpi slt, %0, %c1_i32 : i32
    %2 = arith.extui %1 : i1 to i32
    %c0_i32 = arith.constant 0 : i32
    %3 = arith.cmpi ne, %2, %c0_i32 : i32
    scf.if %3 {
      %c0 = arith.constant 0 : index
      %c0_2 = arith.constant 0 : index
      %7 = vector.load %arg2[%c0, %c0_2] : memref<8x32xf32, #tpu.memory_space<vmem>>, vector<8x32xf32>
      %8 = arith.mulf %7, %7 : vector<8x32xf32>
      %cst = arith.constant dense<0.000000e+00> : vector<8xf32>
      %9 = vector.multi_reduction <add>, %8, %cst [1] : vector<8x32xf32> to vector<8xf32>
      %10 = vector.shape_cast %9 : vector<8xf32> to vector<8x1xf32>
      %11 = math.sqrt %10 : vector<8x1xf32>
      %cst_3 = arith.constant 9.99999996E-13 : f32
      %12 = vector.broadcast %cst_3 : f32 to vector<8x1xf32>
      %13 = arith.addf %11, %12 : vector<8x1xf32>
      %cst_4 = arith.constant 1.000000e+00 : f32
      %14 = vector.broadcast %cst_4 : f32 to vector<8x1xf32>
      %15 = arith.divf %14, %13 : vector<8x1xf32>
      %16 = vector.broadcast %15 : vector<8x1xf32> to vector<8x32xf32>
      %17 = arith.mulf %7, %16 : vector<8x32xf32>
      %c0_i32_5 = arith.constant 0 : i32
      %18 = arith.cmpi eq, %arg1, %c0_i32_5 : i32
      %19 = arith.extui %18 : i1 to i32
      %c0_i32_6 = arith.constant 0 : i32
      %20 = arith.cmpi ne, %19, %c0_i32_6 : i32
      scf.if %20 {
        %cst_52 = arith.constant 0.000000e+00 : f32
        %91 = vector.broadcast %cst_52 : f32 to vector<1x8xf32>
        %c0_53 = arith.constant 0 : index
        %c0_54 = arith.constant 0 : index
        %92 = vector.load %arg8[%c0_53, %c0_54] : memref<1x8xf32, #tpu.memory_space<vmem>>, vector<1x8xf32>
        tpu.vector_store %arg8[%c0_53, %c0_54], %91 {strides = array<i32>} : memref<1x8xf32, #tpu.memory_space<vmem>>, vector<1x8xf32>,
        %c0_55 = arith.constant 0 : index
        %c0_56 = arith.constant 0 : index
        %93 = vector.load %arg9[%c0_55, %c0_56] : memref<1x8xf32, #tpu.memory_space<vmem>>, vector<1x8xf32>
        tpu.vector_store %arg9[%c0_55, %c0_56], %91 {strides = array<i32>} : memref<1x8xf32, #tpu.memory_space<vmem>>, vector<1x8xf32>,
        %c0_57 = arith.constant 0 : index
        %c0_58 = arith.constant 0 : index
        %94 = vector.load %arg10[%c0_57, %c0_58] : memref<1x8xf32, #tpu.memory_space<vmem>>, vector<1x8xf32>
        tpu.vector_store %arg10[%c0_57, %c0_58], %91 {strides = array<i32>} : memref<1x8xf32, #tpu.memory_space<vmem>>, vector<1x8xf32>,
        %c0_59 = arith.constant 0 : index
        %c0_60 = arith.constant 0 : index
        %95 = vector.load %arg11[%c0_59, %c0_60] : memref<1x8xf32, #tpu.memory_space<vmem>>, vector<1x8xf32>
        tpu.vector_store %arg11[%c0_59, %c0_60], %91 {strides = array<i32>} : memref<1x8xf32, #tpu.memory_space<vmem>>, vector<1x8xf32>,
        %c0_61 = arith.constant 0 : index
        %c0_62 = arith.constant 0 : index
        %96 = vector.load %arg7[%c0_61, %c0_62] : memref<8x32xf32, #tpu.memory_space<vmem>>, vector<8x32xf32>
        tpu.vector_store %arg7[%c0_61, %c0_62], %17 {strides = array<i32>} : memref<8x32xf32, #tpu.memory_space<vmem>>, vector<8x32xf32>,
      } else {
      }
      %c0_7 = arith.constant 0 : index
      %c0_8 = arith.constant 0 : index
      %21 = vector.load %arg7[%c0_7, %c0_8] : memref<8x32xf32, #tpu.memory_space<vmem>>, vector<8x32xf32>
      %cst_9 = arith.constant dense<0.000000e+00> : vector<8x8xf32>
      %22 = tpu.matmul %21, %17, %cst_9 {dimension_numbers = #tpu.dot_dimension_numbers<[1], [1], [0], [0], [0, 0, 1, 0], [], []>} : vector<8x32xf32>, vector<8x32xf32>, vector<8x8xf32> -> vector<8x8xf32>
      %c0_10 = arith.constant 0 : index
      %c0_11 = arith.constant 0 : index
      %23 = vector.load %arg3[%c0_10, %c0_11] : memref<8x1xi32, #tpu.memory_space<vmem>>, vector<8x1xi32>
      %c0_12 = arith.constant 0 : index
      %c0_13 = arith.constant 0 : index
      %24 = vector.load %arg4[%c0_12, %c0_13] : memref<1x8xi32, #tpu.memory_space<vmem>>, vector<1x8xi32>
      %25 = vector.broadcast %23 : vector<8x1xi32> to vector<8x8xi32>
      %26 = vector.broadcast %24 : vector<1x8xi32> to vector<8x8xi32>
      %27 = arith.cmpi eq, %25, %26 : vector<8x8xi32>
      %cst_14 = arith.constant 1.250000e+00 : f32
      %28 = vector.broadcast %cst_14 : f32 to vector<8x8xf32>
      %29 = arith.subf %22, %28 : vector<8x8xf32>
      %cst_15 = arith.constant 0.000000e+00 : f32
      %30 = vector.broadcast %cst_15 : f32 to vector<8x8xf32>
      %31 = arith.minimumf %29, %30 : vector<8x8xf32>
      %cst_16 = arith.constant 2.500000e-01 : f32
      %32 = vector.broadcast %cst_16 : f32 to vector<8x8xf32>
      %33 = arith.addf %22, %32 : vector<8x8xf32>
      %cst_17 = arith.constant 0.000000e+00 : f32
      %34 = vector.broadcast %cst_17 : f32 to vector<8x8xf32>
      %35 = arith.maximumf %33, %34 : vector<8x8xf32>
      %cst_18 = arith.constant 7.500000e-01 : f32
      %36 = vector.broadcast %cst_18 : f32 to vector<8x8xf32>
      %37 = arith.subf %22, %36 : vector<8x8xf32>
      %38 = arith.mulf %31, %37 : vector<8x8xf32>
      %cst_19 = arith.constant 2.500000e-01 : f32
      %39 = vector.broadcast %cst_19 : f32 to vector<8x8xf32>
      %40 = arith.subf %22, %39 : vector<8x8xf32>
      %41 = arith.mulf %35, %40 : vector<8x8xf32>
      %42 = arith.select %27, %38, %41 : vector<8x8xi1>, vector<8x8xf32>
      %cst_20 = arith.constant 8.000000e+01 : f32
      %43 = vector.broadcast %cst_20 : f32 to vector<8x8xf32>
      %44 = arith.mulf %42, %43 : vector<8x8xf32>
      %c0_21 = arith.constant 0 : index
      %c0_22 = arith.constant 0 : index
      %c0_23 = arith.constant 0 : index
      %45 = vector.load %arg5[%c0_21, %c0_22, %c0_23] : memref<1x8x8xf32, #tpu.memory_space<vmem>>, vector<1x8x8xf32>
      %46 = vector.shape_cast %45 : vector<1x8x8xf32> to vector<8x8xf32>
      %47 = arith.addf %44, %46 : vector<8x8xf32>
      %cst_24 = arith.constant -1.000000e+30 : f32
      %48 = vector.broadcast %cst_24 : f32 to vector<8x8xf32>
      %49 = arith.select %27, %47, %48 : vector<8x8xi1>, vector<8x8xf32>
      %cst_25 = arith.constant -1.000000e+30 : f32
      %50 = vector.broadcast %cst_25 : f32 to vector<8x8xf32>
      %51 = arith.select %27, %50, %47 : vector<8x8xi1>, vector<8x8xf32>
      %c0_26 = arith.constant 0 : index
      %c0_27 = arith.constant 0 : index
      %52 = vector.load %arg8[%c0_26, %c0_27] : memref<1x8xf32, #tpu.memory_space<vmem>>, vector<1x8xf32>
      %cst_28 = arith.constant dense<0xFF800000> : vector<8xf32>
      %53 = vector.multi_reduction <maximumf>, %49, %cst_28 [0] : vector<8x8xf32> to vector<8xf32>
      %54 = vector.shape_cast %53 : vector<8xf32> to vector<1x8xf32>
      %55 = arith.maximumf %52, %54 : vector<1x8xf32>
      %c0_29 = arith.constant 0 : index
      %c0_30 = arith.constant 0 : index
      %56 = vector.load %arg10[%c0_29, %c0_30] : memref<1x8xf32, #tpu.memory_space<vmem>>, vector<1x8xf32>
      %cst_31 = arith.constant dense<0xFF800000> : vector<8xf32>
      %57 = vector.multi_reduction <maximumf>, %51, %cst_31 [0] : vector<8x8xf32> to vector<8xf32>
      %58 = vector.shape_cast %57 : vector<8xf32> to vector<1x8xf32>
      %59 = arith.maximumf %56, %58 : vector<1x8xf32>
      %60 = vector.shape_cast %55 : vector<1x8xf32> to vector<1x8xf32>
      %61 = vector.broadcast %60 : vector<1x8xf32> to vector<8x8xf32>
      %62 = vector.shape_cast %59 : vector<1x8xf32> to vector<1x8xf32>
      %63 = vector.broadcast %62 : vector<1x8xf32> to vector<8x8xf32>
      %64 = arith.select %27, %61, %63 : vector<8x8xi1>, vector<8x8xf32>
      %65 = arith.subf %47, %64 : vector<8x8xf32>
      %66 = math.exp %65 : vector<8x8xf32>
      %cst_32 = arith.constant 0.000000e+00 : f32
      %67 = vector.broadcast %cst_32 : f32 to vector<8x8xf32>
      %68 = arith.select %27, %66, %67 : vector<8x8xi1>, vector<8x8xf32>
      %cst_33 = arith.constant dense<0.000000e+00> : vector<8xf32>
      %69 = vector.multi_reduction <add>, %68, %cst_33 [0] : vector<8x8xf32> to vector<8xf32>
      %70 = vector.shape_cast %69 : vector<8xf32> to vector<1x8xf32>
      %cst_34 = arith.constant 0.000000e+00 : f32
      %71 = vector.broadcast %cst_34 : f32 to vector<8x8xf32>
      %72 = arith.select %27, %71, %66 : vector<8x8xi1>, vector<8x8xf32>
      %cst_35 = arith.constant dense<0.000000e+00> : vector<8xf32>
      %73 = vector.multi_reduction <add>, %72, %cst_35 [0] : vector<8x8xf32> to vector<8xf32>
      %74 = vector.shape_cast %73 : vector<8xf32> to vector<1x8xf32>
      %c0_36 = arith.constant 0 : index
      %c0_37 = arith.constant 0 : index
      %75 = vector.load %arg9[%c0_36, %c0_37] : memref<1x8xf32, #tpu.memory_space<vmem>>, vector<1x8xf32>
      %c0_38 = arith.constant 0 : index
      %c0_39 = arith.constant 0 : index
      %76 = vector.load %arg8[%c0_38, %c0_39] : memref<1x8xf32, #tpu.memory_space<vmem>>, vector<1x8xf32>
      %77 = arith.subf %76, %55 : vector<1x8xf32>
      %78 = math.exp %77 : vector<1x8xf32>
      %79 = arith.mulf %75, %78 : vector<1x8xf32>
      %80 = arith.addf %79, %70 : vector<1x8xf32>
      %c0_40 = arith.constant 0 : index
      %c0_41 = arith.constant 0 : index
      %81 = vector.load %arg9[%c0_40, %c0_41] : memref<1x8xf32, #tpu.memory_space<vmem>>, vector<1x8xf32>
      tpu.vector_store %arg9[%c0_40, %c0_41], %80 {strides = array<i32>} : memref<1x8xf32, #tpu.memory_space<vmem>>, vector<1x8xf32>,
      %c0_42 = arith.constant 0 : index
      %c0_43 = arith.constant 0 : index
      %82 = vector.load %arg11[%c0_42, %c0_43] : memref<1x8xf32, #tpu.memory_space<vmem>>, vector<1x8xf32>
      %c0_44 = arith.constant 0 : index
      %c0_45 = arith.constant 0 : index
      %83 = vector.load %arg10[%c0_44, %c0_45] : memref<1x8xf32, #tpu.memory_space<vmem>>, vector<1x8xf32>
      %84 = arith.subf %83, %59 : vector<1x8xf32>
      %85 = math.exp %84 : vector<1x8xf32>
      %86 = arith.mulf %82, %85 : vector<1x8xf32>
      %87 = arith.addf %86, %74 : vector<1x8xf32>
      %c0_46 = arith.constant 0 : index
      %c0_47 = arith.constant 0 : index
      %88 = vector.load %arg11[%c0_46, %c0_47] : memref<1x8xf32, #tpu.memory_space<vmem>>, vector<1x8xf32>
      tpu.vector_store %arg11[%c0_46, %c0_47], %87 {strides = array<i32>} : memref<1x8xf32, #tpu.memory_space<vmem>>, vector<1x8xf32>,
      %c0_48 = arith.constant 0 : index
      %c0_49 = arith.constant 0 : index
      %89 = vector.load %arg8[%c0_48, %c0_49] : memref<1x8xf32, #tpu.memory_space<vmem>>, vector<1x8xf32>
      tpu.vector_store %arg8[%c0_48, %c0_49], %55 {strides = array<i32>} : memref<1x8xf32, #tpu.memory_space<vmem>>, vector<1x8xf32>,
      %c0_50 = arith.constant 0 : index
      %c0_51 = arith.constant 0 : index
      %90 = vector.load %arg10[%c0_50, %c0_51] : memref<1x8xf32, #tpu.memory_space<vmem>>, vector<1x8xf32>
      tpu.vector_store %arg10[%c0_50, %c0_51], %59 {strides = array<i32>} : memref<1x8xf32, #tpu.memory_space<vmem>>, vector<1x8xf32>,
    } else {
    }
    %c0_i32_0 = arith.constant 0 : i32
    %4 = arith.cmpi eq, %arg1, %c0_i32_0 : i32
    %5 = arith.extui %4 : i1 to i32
    %c0_i32_1 = arith.constant 0 : i32
    %6 = arith.cmpi ne, %5, %c0_i32_1 : i32
    scf.if %6 {
      %c0 = arith.constant 0 : index
      %c0_2 = arith.constant 0 : index
      %7 = vector.load %arg8[%c0, %c0_2] : memref<1x8xf32, #tpu.memory_space<vmem>>, vector<1x8xf32>
      %c0_3 = arith.constant 0 : index
      %c0_4 = arith.constant 0 : index
      %c0_5 = arith.constant 0 : index
      %8 = vector.load %arg6[%c0_3, %c0_4, %c0_5] : memref<1x4x8xf32, #tpu.memory_space<vmem>>, vector<1x1x8xf32>
      %9 = vector.shape_cast %8 : vector<1x1x8xf32> to vector<1x8xf32>
      %10 = vector.shape_cast %7 : vector<1x8xf32> to vector<1x1x8xf32>
      tpu.vector_store %arg6[%c0_3, %c0_4, %c0_5], %10 {strides = array<i32>} : memref<1x4x8xf32, #tpu.memory_space<vmem>>, vector<1x1x8xf32>,
      %c0_6 = arith.constant 0 : index
      %c0_7 = arith.constant 0 : index
      %11 = vector.load %arg9[%c0_6, %c0_7] : memref<1x8xf32, #tpu.memory_space<vmem>>, vector<1x8xf32>
      %c0_8 = arith.constant 0 : index
      %c1 = arith.constant 1 : index
      %c0_9 = arith.constant 0 : index
      %12 = vector.load %arg6[%c0_8, %c1, %c0_9] : memref<1x4x8xf32, #tpu.memory_space<vmem>>, vector<1x1x8xf32>
      %13 = vector.shape_cast %12 : vector<1x1x8xf32> to vector<1x8xf32>
      %14 = vector.shape_cast %11 : vector<1x8xf32> to vector<1x1x8xf32>
      tpu.vector_store %arg6[%c0_8, %c1, %c0_9], %14 {strides = array<i32>} : memref<1x4x8xf32, #tpu.memory_space<vmem>>, vector<1x1x8xf32>,
      %c0_10 = arith.constant 0 : index
      %c0_11 = arith.constant 0 : index
      %15 = vector.load %arg10[%c0_10, %c0_11] : memref<1x8xf32, #tpu.memory_space<vmem>>, vector<1x8xf32>
      %c0_12 = arith.constant 0 : index
      %c2 = arith.constant 2 : index
      %c0_13 = arith.constant 0 : index
      %16 = vector.load %arg6[%c0_12, %c2, %c0_13] : memref<1x4x8xf32, #tpu.memory_space<vmem>>, vector<1x1x8xf32>
      %17 = vector.shape_cast %16 : vector<1x1x8xf32> to vector<1x8xf32>
      %18 = vector.shape_cast %15 : vector<1x8xf32> to vector<1x1x8xf32>
      tpu.vector_store %arg6[%c0_12, %c2, %c0_13], %18 {strides = array<i32>} : memref<1x4x8xf32, #tpu.memory_space<vmem>>, vector<1x1x8xf32>,
      %c0_14 = arith.constant 0 : index
      %c0_15 = arith.constant 0 : index
      %19 = vector.load %arg11[%c0_14, %c0_15] : memref<1x8xf32, #tpu.memory_space<vmem>>, vector<1x8xf32>
      %c0_16 = arith.constant 0 : index
      %c3 = arith.constant 3 : index
      %c0_17 = arith.constant 0 : index
      %20 = vector.load %arg6[%c0_16, %c3, %c0_17] : memref<1x4x8xf32, #tpu.memory_space<vmem>>, vector<1x1x8xf32>
      %21 = vector.shape_cast %20 : vector<1x1x8xf32> to vector<1x8xf32>
      %22 = vector.shape_cast %19 : vector<1x8xf32> to vector<1x1x8xf32>
      tpu.vector_store %arg6[%c0_16, %c3, %c0_17], %22 {strides = array<i32>} : memref<1x4x8xf32, #tpu.memory_space<vmem>>, vector<1x1x8xf32>,
    } else {
    }
    return
  }
  func.func @transform_0(%arg0: i32, %arg1: i32) -> (i32, i32) {
    %0 = arith.addi %arg0, %arg1 : i32
    %c0_i32 = arith.constant 0 : i32
    %1 = arith.minsi %0, %c0_i32 : i32
    %c0_i32_0 = arith.constant 0 : i32
    %c0_i32_1 = arith.constant 0 : i32
    return %1, %c0_i32_0 : i32, i32
  }
  func.func @transform_1(%arg0: i32, %arg1: i32) -> (i32, i32) {
    %c0_i32 = arith.constant 0 : i32
    %c0_i32_0 = arith.constant 0 : i32
    return %arg0, %c0_i32 : i32, i32
  }
  func.func @transform_2(%arg0: i32, %arg1: i32) -> (i32, i32) {
    %0 = arith.addi %arg0, %arg1 : i32
    %c0_i32 = arith.constant 0 : i32
    %1 = arith.minsi %0, %c0_i32 : i32
    %c0_i32_0 = arith.constant 0 : i32
    %c0_i32_1 = arith.constant 0 : i32
    return %c0_i32_0, %1 : i32, i32
  }
  func.func @transform_3(%arg0: i32, %arg1: i32) -> (i32, i32, i32) {
    %c0_i32 = arith.constant 0 : i32
    %0 = arith.cmpi eq, %arg1, %c0_i32 : i32
    %c1_i32 = arith.constant 1 : i32
    %c0_i32_0 = arith.constant 0 : i32
    %1 = arith.select %0, %c1_i32, %c0_i32_0 : i32
    %c0_i32_1 = arith.constant 0 : i32
    %c0_i32_2 = arith.constant 0 : i32
    %c0_i32_3 = arith.constant 0 : i32
    return %1, %c0_i32_1, %c0_i32_2 : i32, i32, i32
  }
  func.func @transform_4(%arg0: i32, %arg1: i32) -> (i32, i32, i32) {
    %c0_i32 = arith.constant 0 : i32
    %c0_i32_0 = arith.constant 0 : i32
    %c0_i32_1 = arith.constant 0 : i32
    return %arg0, %c0_i32, %c0_i32_0 : i32, i32, i32
  }
}

</mosaic_0001>

<llo_original>
// kernel: tpu_custom_call.1
$region0: #{tpu_custom_call.1}
  #allocation0 [shape = 'u32[]', space=smem, size = 0x4, offset = 0x4, fixed_abs, tag = 'smem constant byte address 0x4 - core index']
  #allocation1 [shape = 'u32[144,128]{1,0:T(1,128)}', space=vmem, size = 0x12000, scoped, tag = 'internal scratch']
  #allocation2 [shape = 'f32[8,32]{1,0:T(8,128)}', space=vmem, size = 0x1000, scoped, tag = 'scratch operand']
  #allocation3 [shape = 'f32[1,8]{1,0:T(1,128)}', space=vmem, size = 0x200, scoped, tag = 'scratch operand']
  #allocation4 [shape = 'f32[1,8]{1,0:T(1,128)}', space=vmem, size = 0x200, scoped, tag = 'scratch operand']
  #allocation5 [shape = 'f32[1,8]{1,0:T(1,128)}', space=vmem, size = 0x200, scoped, tag = 'scratch operand']
  #allocation6 [shape = 'f32[1,8]{1,0:T(1,128)}', space=vmem, size = 0x200, scoped, tag = 'scratch operand']
  %s0 = inlined_call_operand.vmem [shape: f32[8,32], index: 0, kind: input, shape index: {}]
  %s1 = inlined_call_operand.vmem [shape: s32[8,1], index: 1, kind: input, shape index: {}]
  %s2 = inlined_call_operand.vmem [shape: s32[1,8], index: 2, kind: input, shape index: {}]
  %s3 = inlined_call_operand.hbm [shape: f32[2,8,8], index: 3, kind: input, shape index: {}]
  %s4 = inlined_call_operand.hbm [shape: f32[1,4,8], index: 4, kind: output, shape index: {}]
  %s5 = sld [smem:[#allocation0]]
  $region42: #{tpu_custom_call.1} parent=0
    _
  %s7 = ssub.s32 1, %s5
  %s8 = scalar_select 0, %s7, %s5
  $region1: #{tpu_custom_call.1} parent=0
    #allocation7 [shape = 'u8[4096]{0}', space=vmem, size = 0x1000, scoped, tag = 'input window, operand 3, single buffered']
    #allocation8 [shape = 's32[1]{0}', space=sflag, size = 0x4, scoped, tag = 'scoped memory for tpu_custom_call.1']
    #allocation9 [shape = 's32[1]{0}', space=sflag, size = 0x4, scoped, tag = 'scoped memory for tpu_custom_call.1']
    #allocation10 [shape = 'u8[2048]{0}', space=vmem, size = 0x800, scoped, tag = 'output window, operand 0, single buffered']
    %9 = vsyncpa [#allocation8], 0
    %10 = vsyncpa [#allocation9], 0
    // Predicated region
    $region2: #{tpu_custom_call.1} parent=1 // pred_check
      _
    $region3: #{tpu_custom_call.1} parent=1 // pred_check_branch
      %12 = sbr.rel (0) target = $region5
    $region4: #{tpu_custom_call.1} parent=1 // pred_region
      %s13 = sadd.s32 0, 0
      %p14 = scmp.lt.s32.totalorder %s13, 0
      %s15 = scalar_select %p14, %s13, 0
      %p16 = scmp.lt.s32.totalorder %s15, 0
      %s17 = scalar_select %p16, %s15, 0
      %s18 = smul.addr %s17, 8
      %s19 = scalar_lea.vmem %s0, %s18
      %s20 = sadd.s32 0, 0
      %p21 = scmp.lt.s32.totalorder %s20, 0
      %s22 = scalar_select %p21, %s20, 0
    $region5: #{tpu_custom_call.1} parent=1 // pred_fallthru
      _
    // Predicated region
    $region6: #{tpu_custom_call.1} parent=1 // pred_check
      _
    $region7: #{tpu_custom_call.1} parent=1 // pred_check_branch
      %24 = sbr.rel (0) target = $region9
    $region8: #{tpu_custom_call.1} parent=1 // pred_region
      _
    $region9: #{tpu_custom_call.1} parent=1 // pred_fallthru
      _
    // Predicated region
    $region10: #{tpu_custom_call.1} parent=1 // pred_check
      _
    $region11: #{tpu_custom_call.1} parent=1 // pred_check_branch
      %26 = sbr.rel (0) target = $region13
    $region12: #{tpu_custom_call.1} parent=1 // pred_region
      %s27 = sadd.s32 0, 0
      %p28 = scmp.lt.s32.totalorder %s27, 0
      %s29 = scalar_select %p28, %s27, 0
      %p30 = scmp.lt.s32.totalorder %s29, 0
      %s31 = scalar_select %p30, %s29, 0
      %s32 = scalar_lea.vmem %s2, %s31
      %s33 = sadd.s32 0, 0
      %p34 = scmp.lt.s32.totalorder %s33, 0
      %s35 = scalar_select %p34, %s33, 0
    $region13: #{tpu_custom_call.1} parent=1 // pred_fallthru
      _
    // Predicated region
    $region14: #{tpu_custom_call.1} parent=1 // pred_check
      _
    $region15: #{tpu_custom_call.1} parent=1 // pred_check_branch
      %37 = sbr.rel (0) target = $region17
    $region16: #{tpu_custom_call.1} parent=1 // pred_region
      %p38 = scmp.eq.s32.totalorder 0, 0
      %s39 = scalar_select %p38, 1, 0
      %s41 = ssub.s32 128, 128
      %42 = vsyncadd [#allocation8], %s41
      %s43 = smul.addr %s39, 128
      %s44 = scalar_lea.hbm %s3, %s43
      %s46 = sshll.u32 [#allocation7], 4
      %s47 = int_to_ptr.vmem [resolvable:$true] %s46
      %49 = dma.hbm_to_vmem [thread:$0]  %s44, 128, %s47, [#allocation8]
    $region17: #{tpu_custom_call.1} parent=1 // pred_fallthru
      _
    // Predicated region
    $region18: #{tpu_custom_call.1} parent=1 // pred_check
      _
    $region19: #{tpu_custom_call.1} parent=1 // pred_check_branch
      %51 = sbr.rel (0) target = $region21
    $region20: #{tpu_custom_call.1} parent=1 // pred_region
      %52 = dma.done [#allocation8], 128
    $region21: #{tpu_custom_call.1} parent=1 // pred_fallthru
      _
    %s53 = sadd.s32 0, 0
    %p54 = scmp.lt.s32.totalorder %s53, 0
    %s55 = scalar_select %p54, %s53, 0
    %p56 = scmp.lt.s32.totalorder %s55, 0
    %s57 = scalar_select %p56, %s55, 0
    %s58 = smul.addr %s57, 8
    %s59 = scalar_lea.vmem %s0, %s58
    %s60 = sadd.s32 0, 0
    %p61 = scmp.lt.s32.totalorder %s60, 0
    %s62 = scalar_select %p61, %s60, 0
    %p63 = scmp.lt.s32.totalorder %s62, 0
    %s64 = scalar_select %p63, %s62, 0
    %s65 = scalar_lea.vmem %s2, %s64
    %s66 = sadd.s32 0, 0
    %p67 = scmp.lt.s32.totalorder %s66, 0
    %s68 = scalar_select %p67, %s66, 0
    %p69 = scmp.lt.s32.totalorder %s68, 0
    %s70 = scalar_select %p69, %s68, 0
    %s71 = smul.addr %s70, 8
    %s72 = scalar_lea.vmem %s0, %s71
    %s73 = sadd.s32 0, 0
    %p74 = scmp.lt.s32.totalorder %s73, 0
    %s75 = scalar_select %p74, %s73, 0
    %s76 = sadd.s32 0, 0
    %p77 = scmp.lt.s32.totalorder %s76, 0
    %s78 = scalar_select %p77, %s76, 0
    %p79 = scmp.lt.s32.totalorder %s78, 0
    %s80 = scalar_select %p79, %s78, 0
    %s81 = scalar_lea.vmem %s2, %s80
    %s82 = sadd.s32 0, 0
    %p83 = scmp.lt.s32.totalorder %s82, 0
    %s84 = scalar_select %p83, %s82, 0
    %p85 = scmp.eq.s32.totalorder 0, 0
    %s86 = scalar_select %p85, 1, 0
    %s87 = sadd.s32 0, 0
    %p88 = scmp.lt.s32.totalorder %s87, 1
    // Predicated region
    $region22: #{tpu_custom_call.1} parent=1 // pred_check
      %p89 = pneg %p88
    $region23: #{tpu_custom_call.1} parent=1 // pred_check_branch
      %91 = sbr.rel (%p89) target = $region25
    $region24: #{tpu_custom_call.1} parent=1 // pred_region
      %v92 = vld [vmem:[%s72] sm:$0xff]
      %v93 = vmul.f32 %v92, %v92
      %vm94 = vcmask 261120
      %v95 = vsel %vm94, %v93, 0.0
      %96 = vadd.xlane.f32.xlu0 %v95
      %v97 = vpop.xlane.xlu0 %96
      %v98 = vrsqrt.pop %v97
      %v99 = vmul.f32 %v97, %v98
      %vm100 = vcmp.eq.f32.partialorder %v97, inf
      %v101 = vsel %vm100, %v97, %v99
      %vm102 = vcmp.eq.f32.partialorder %v97, 0.0
      %v103 = vand.u32 %v97, 2147483648
      %v104 = vsel %vm102, %v103, %v101
      %v105 = vadd.f32 %v104, 1e-12
      %v106 = vrcp.pop %v105
      %v107 = vmul.f32 1.0, %v106
      %v108 = vmul.f32 %v92, %v107
      %p109 = scmp.eq.s32.totalorder 0, 0
      // Predicated region
      $region26: #{tpu_custom_call.1} parent=24 // pred_check
        %p110 = pneg %p109
      $region27: #{tpu_custom_call.1} parent=24 // pred_check_branch
        %112 = sbr.rel (%p110) target = $region29
      $region28: #{tpu_custom_call.1} parent=24 // pred_region
        %vm113 = vcmask 57344
        %114 = vst.msk [vmem:[#allocation3] sm:$0x1] %vm113, 0.0
        %115 = vst.msk [vmem:[#allocation4] sm:$0x1] %vm113, 0.0
        %116 = vst.msk [vmem:[#allocation5] sm:$0x1] %vm113, 0.0
        %117 = vst.msk [vmem:[#allocation6] sm:$0x1] %vm113, 0.0
        %118 = vst.msk [vmem:[#allocation2] sm:$0xff] %vm94, %v108
      $region29: #{tpu_custom_call.1} parent=24 // pred_fallthru
        _
      %v119 = vld [vmem:[#allocation2] sm:$0xff]
      %v121 = vsel %vm94, %v119, 0
      %v124 = vsel %vm94, %v108, 0
      %126 = vmatprep.subr.mxu0 0.0
      %127 = vmatpush1.xpose.msra.mxu0 0.0
      %128 = vmatprep.subr.mxu0 0.0
      %129 = vmatpush1.xpose.msra.mxu0 0.0
      %130 = vmatprep.subr.mxu0 0.0
      %131 = vmatpush1.xpose.msra.mxu0 0.0
      %132 = vmatprep.subr.mxu0 0.0
      %133 = vmatpush1.xpose.msra.mxu0 0.0
      %134 = vmatprep.subr.mxu0 0.0
      %135 = vmatpush1.xpose.msra.mxu0 0.0
      %136 = vmatprep.subr.mxu0 0.0
      %137 = vmatpush1.xpose.msra.mxu0 0.0
      %138 = vmatprep.subr.mxu0 0.0
      %139 = vmatpush1.xpose.msra.mxu0 0.0
      %140 = vmatprep.subr.mxu0 0.0
      %141 = vmatpush1.xpose.msra.mxu0 0.0
      %142 = vmatprep.subr.mxu0 0.0
      %143 = vmatpush1.xpose.msra.mxu0 0.0
      %144 = vmatprep.subr.mxu0 0.0
      %145 = vmatpush1.xpose.msra.mxu0 0.0
      %146 = vmatprep.subr.mxu0 0.0
      %147 = vmatpush1.xpose.msra.mxu0 0.0
      %148 = vmatprep.subr.mxu0 0.0
      %149 = vmatpush1.xpose.msra.mxu0 0.0
      %150 = vmatprep.subr.mxu0 0.0
      %151 = vmatpush1.xpose.msra.mxu0 0.0
      %152 = vmatprep.subr.mxu0 0.0
      %153 = vmatpush1.xpose.msra.mxu0 0.0
      %154 = vmatprep.subr.mxu0 0.0
      %155 = vmatpush1.xpose.msra.mxu0 0.0
      %156 = vmatprep.subr.mxu0 0.0
      %157 = vmatpush1.xpose.msra.mxu0 %v124
      %158 = vmatprep.subr.mxu0 0.0
      %159 = vmatpush2.xpose.msra.mxu0 0.0
      %160 = vmatprep.subr.mxu0 0.0
      %161 = vmatpush2.xpose.msra.mxu0 0.0
      %162 = vmatprep.subr.mxu0 0.0
      %163 = vmatpush2.xpose.msra.mxu0 0.0
      %164 = vmatprep.subr.mxu0 0.0
      %165 = vmatpush2.xpose.msra.mxu0 0.0
      %166 = vmatprep.subr.mxu0 0.0
      %167 = vmatpush2.xpose.msra.mxu0 0.0
      %168 = vmatprep.subr.mxu0 0.0
      %169 = vmatpush2.xpose.msra.mxu0 0.0
      %170 = vmatprep.subr.mxu0 0.0
      %171 = vmatpush2.xpose.msra.mxu0 0.0
      %172 = vmatprep.subr.mxu0 0.0
      %173 = vmatpush2.xpose.msra.mxu0 0.0
      %174 = vmatprep.subr.mxu0 0.0
      %175 = vmatpush2.xpose.msra.mxu0 0.0
      %176 = vmatprep.subr.mxu0 0.0
      %177 = vmatpush2.xpose.msra.mxu0 0.0
      %178 = vmatprep.subr.mxu0 0.0
      %179 = vmatpush2.xpose.msra.mxu0 0.0
      %180 = vmatprep.subr.mxu0 0.0
      %181 = vmatpush2.xpose.msra.mxu0 0.0
      %182 = vmatprep.subr.mxu0 0.0
      %183 = vmatpush2.xpose.msra.mxu0 0.0
      %184 = vmatprep.subr.mxu0 0.0
      %185 = vmatpush2.xpose.msra.mxu0 0.0
      %186 = vmatprep.subr.mxu0 0.0
      %187 = vmatpush2.xpose.msra.mxu0 0.0
      %188 = vmatprep.subr.mxu0 0.0
      %189 = vmatpush2.xpose.msra.mxu0 0.0
      %190 = vmatprep.mubr.f32.mxu0 0.0
      %191 = vmatmul.mubr.f32.gmra.mxu0 %v121
      %v192 = vpop.f32.mrf.mxu0
      %v193 = vadd.f32 0.0, %v192
      %v194 = vpop.f32.mrf.mxu0
      %195 = vdwg.mxu0
      %v196 = vld [vmem:[%s1] sm:$0xff]
      %v197 = vld [vmem:[%s81] sm:$0x1]
      %198 = vset.pattern.permute.xlu0 0
      %199 = vperm.xlu0 %198, %v196
      %v200 = vpop.permute.xlu0 %199
      %v201 = vlaneseq
      %v202 = vshrl.u32 %v201, 7
      %v203 = vsub.s32 0, %v202
      %v204 = vrot.slane %v197, %v203
      %vm205 = vcmp.eq.s32.totalorder %v200, %v204
      %v206 = vsub.f32 %v193, 1.25
      %v207 = vmin.f32 %v206, 0.0
      %v208 = vadd.f32 %v193, 0.25
      %v209 = vmax.f32 %v208, 0.0
      %v210 = vsub.f32 %v193, 0.75
      %v211 = vmul.f32 %v207, %v210
      %v212 = vsub.f32 %v193, 0.25
      %v213 = vmul.f32 %v209, %v212
      %v214 = vsel %vm205, %v211, %v213
      %v215 = vmul.f32 %v214, 80.0
      %v216 = vld [vmem:[#allocation7] sm:$0xff]
      %v217 = vadd.f32 %v215, %v216
      %v218 = vsel %vm205, %v217, -1e+30
      %v219 = vsel %vm205, -1e+30, %v217
      %v220 = vld [vmem:[#allocation3] sm:$0x1]
      %vm221 = vcmask 64512
      %v222 = vsel %vm221, %v218, -inf
      %v223 = vrot.slane %v222, 4
      %v224 = vmax.f32 %v222, %v223
      %v225 = vrot.slane %v224, 2
      %v226 = vmax.f32 %v224, %v225
      %v227 = vrot.slane %v226, 1
      %v228 = vmax.f32 %v226, %v227
      %v229 = vmax.f32 %v220, %v228
      %v230 = vld [vmem:[#allocation5] sm:$0x1]
      %v231 = vsel %vm221, %v219, -inf
      %v232 = vrot.slane %v231, 4
      %v233 = vmax.f32 %v231, %v232
      %v234 = vrot.slane %v233, 2
      %v235 = vmax.f32 %v233, %v234
      %v236 = vrot.slane %v235, 1
      %v237 = vmax.f32 %v235, %v236
      %v238 = vmax.f32 %v230, %v237
      %v240 = vlaneseq
      %v241 = vshrl.u32 %v240, 7
      %v242 = vsub.s32 0, %v241
      %v243 = vrot.slane %v229, %v242
      %v246 = vlaneseq
      %v247 = vshrl.u32 %v246, 7
      %v248 = vsub.s32 0, %v247
      %v249 = vrot.slane %v238, %v248
      %v251 = vsel %vm205, %v243, %v249
      %v252 = vsub.f32 %v217, %v251
      %v253 = vmul.f32 %v252, 1.442695
      %v254 = vpow.pop %v253
      %v255 = vsel %vm205, %v254, 0.0
      %v256 = vsel %vm221, %v255, 0.0
      %v257 = vrot.slane %v256, 4
      %v258 = vadd.f32 %v256, %v257
      %v259 = vrot.slane %v258, 2
      %v260 = vadd.f32 %v258, %v259
      %v261 = vrot.slane %v260, 1
      %v262 = vadd.f32 %v260, %v261
      %v263 = vsel %vm205, 0.0, %v254
      %v264 = vsel %vm221, %v263, 0.0
      %v265 = vrot.slane %v264, 4
      %v266 = vadd.f32 %v264, %v265
      %v267 = vrot.slane %v266, 2
      %v268 = vadd.f32 %v266, %v267
      %v269 = vrot.slane %v268, 1
      %v270 = vadd.f32 %v268, %v269
      %v271 = vld [vmem:[#allocation4] sm:$0x1]
      %v272 = vsub.f32 %v220, %v229
      %v273 = vmul.f32 %v272, 1.442695
      %v274 = vpow.pop %v273
      %v275 = vmul.f32 %v271, %v274
      %v276 = vadd.f32 %v275, %v262
      %vm277 = vcmask 57344
      %278 = vst.msk [vmem:[#allocation4] sm:$0x1] %vm277, %v276
      %v279 = vld [vmem:[#allocation6] sm:$0x1]
      %v280 = vld [vmem:[#allocation5] sm:$0x1]
      %v281 = vsub.f32 %v280, %v238
      %v282 = vmul.f32 %v281, 1.442695
      %v283 = vpow.pop %v282
      %v284 = vmul.f32 %v279, %v283
      %v285 = vadd.f32 %v284, %v270
      %286 = vst.msk [vmem:[#allocation6] sm:$0x1] %vm277, %v285
      %287 = vst.msk [vmem:[#allocation3] sm:$0x1] %vm277, %v229
      %288 = vst.msk [vmem:[#allocation5] sm:$0x1] %vm277, %v238
    $region25: #{tpu_custom_call.1} parent=1 // pred_fallthru
      _
    %p289 = scmp.eq.s32.totalorder 0, 0
    // Predicated region
    $region30: #{tpu_custom_call.1} parent=1 // pred_check
      %p290 = pneg %p289
    $region31: #{tpu_custom_call.1} parent=1 // pred_check_branch
      %292 = sbr.rel (%p290) target = $region33
    $region32: #{tpu_custom_call.1} parent=1 // pred_region
      %v293 = vld [vmem:[#allocation3] sm:$0x1]
      %vm294 = vcmask 57344
      %295 = vst.msk [vmem:[#allocation10] sm:$0x1] %vm294, %v293
      %v296 = vld [vmem:[#allocation4] sm:$0x1]
      %297 = vst.msk [vmem:[#allocation10 + $0x1] sm:$0x1] %vm294, %v296
      %v298 = vld [vmem:[#allocation5] sm:$0x1]
      %299 = vst.msk [vmem:[#allocation10 + $0x2] sm:$0x1] %vm294, %v298
      %v300 = vld [vmem:[#allocation6] sm:$0x1]
      %301 = vst.msk [vmem:[#allocation10 + $0x3] sm:$0x1] %vm294, %v300
    $region33: #{tpu_custom_call.1} parent=1 // pred_fallthru
      _
    // Predicated region
    $region34: #{tpu_custom_call.1} parent=1 // pred_check
      _
    $region35: #{tpu_custom_call.1} parent=1 // pred_check_branch
      %303 = sbr.rel (0) target = $region37
    $region36: #{tpu_custom_call.1} parent=1 // pred_region
      %s305 = ssub.s32 64, 64
      %306 = vsyncadd [#allocation9], %s305
      %s308 = sshll.u32 [#allocation10], 4
      %s309 = int_to_ptr.vmem [resolvable:$true] %s308
      %311 = dma.vmem_to_hbm [thread:$0]  %s309, 64, %s4, [#allocation9]
    $region37: #{tpu_custom_call.1} parent=1 // pred_fallthru
      _
    // Predicated region
    $region38: #{tpu_custom_call.1} parent=1 // pred_check
      _
    $region39: #{tpu_custom_call.1} parent=1 // pred_check_branch
      %313 = sbr.rel (0) target = $region41
    $region40: #{tpu_custom_call.1} parent=1 // pred_region
      %314 = dma.done [#allocation9], 64
    $region41: #{tpu_custom_call.1} parent=1 // pred_fallthru
      _
    %315 = vsyncpa [#allocation8], 1
    %316 = vsyncpa [#allocation9], 1

</llo_original>
